<compile_context>
chip_gen: v7x
topology: tpu7x:2x2x1
jax: 0.10.0
libtpu: 0.0.40
codegen_flags: <defaults>
</compile_context>

<pallas_src>
import functools

import jax
import jax.numpy as jnp
import numpy as np
from jax.experimental import pallas as pl
from jax.experimental.pallas import tpu as pltpu

_SQRT_2_OVER_PI = 0.7978845608028654


def _round_up(n, m):
    return ((n + m - 1) // m) * m


def _gelu_tanh_f32(h):
    # nn.GELU(approximate='tanh'), kept in f32 (v5e has no bf16 VPU/EUP);
    # tanh rides the EUP slot, so it is nearly free next to the matmuls.
    return 0.5 * h * (1.0 + jnp.tanh(_SQRT_2_OVER_PI * h * (1.0 + 0.044715 * h * h)))


def _single_k_kernel(x_ref, w1_ref, b1_ref, w2_ref, b2_ref, o_ref, *, cast_dtype):
    # grid = (gm,): full F resident -> no accumulator scratch / f32 round trip.
    x = x_ref[...]
    w1 = w1_ref[...]
    if cast_dtype is not None:
        x = x.astype(cast_dtype)
        w1 = w1.astype(cast_dtype)
    h = jnp.dot(x, w1, preferred_element_type=jnp.float32)
    h = h + b1_ref[...].astype(jnp.float32)
    g = _gelu_tanh_f32(h)
    w2 = w2_ref[...]
    g = g.astype(cast_dtype if cast_dtype is not None else w2.dtype)
    if cast_dtype is not None:
        w2 = w2.astype(cast_dtype)
    out = jnp.dot(g, w2, preferred_element_type=jnp.float32)
    out = out + b2_ref[...].astype(jnp.float32)
    o_ref[...] = out.astype(o_ref.dtype)


def _multi_k_kernel(x_ref, w1_ref, b1_ref, w2_ref, b2_ref, o_ref, acc_ref, *,
                    cast_dtype):
    # grid = (gm, gk), k innermost ("arbitrary"); acc_ref: (tile_m, Hp) f32.
    k = pl.program_id(1)

    @pl.when(k == 0)
    def _():
        # Fold the b1 add into the accumulator init (saves a VPU add + acc read
        # in the long last-k step).
        acc_ref[...] = jnp.broadcast_to(b1_ref[...].astype(jnp.float32),
                                        acc_ref.shape)

    x = x_ref[...]
    w1 = w1_ref[...]
    if cast_dtype is not None:
        x = x.astype(cast_dtype)
        w1 = w1.astype(cast_dtype)
    acc_ref[...] += jnp.dot(x, w1, preferred_element_type=jnp.float32)

    @pl.when(k == pl.num_programs(1) - 1)
    def _():
        g = _gelu_tanh_f32(acc_ref[...])
        w2 = w2_ref[...]
        g = g.astype(cast_dtype if cast_dtype is not None else w2.dtype)
        if cast_dtype is not None:
            w2 = w2.astype(cast_dtype)
        out = jnp.dot(g, w2, preferred_element_type=jnp.float32)
        out = out + b2_ref[...].astype(jnp.float32)
        o_ref[...] = out.astype(o_ref.dtype)


def _vmem_capacity_bytes():
    try:
        return int(getattr(pltpu.get_tpu_info(), "vmem_capacity_bytes", 64 << 20))
    except Exception:
        return 64 << 20  # conservative (v7x per-core VMEM)


@functools.partial(jax.jit, static_argnames=("tile_m", "tile_k", "mxu_dtype"))
def clip_projection(caption, w1, b1, w2, b2, *, tile_m=None, tile_k=None,
                    mxu_dtype=None):
    """caption [B,T,F]; w1 [F,H]; b1 [H]; w2 [H,H]; b2 [H] -> [B,T,H].

    Weights are stored [in, out] (transposed vs. PyTorch nn.Linear's [out, in]).
    mxu_dtype: optional narrower dtype (e.g. jnp.bfloat16) for the matmul operands
    (accumulation stays f32) to unlock full-rate MXU throughput for f32 inputs.
    """
    B, T, F = caption.shape
    Fw, H = w1.shape
    assert Fw == F, "w1 must be [in_features, hidden_size]"
    M = B * T

    x_item = jnp.dtype(caption.dtype).itemsize
    w_item = jnp.dtype(w1.dtype).itemsize
    sub = max(8, 32 // x_item)                      # sublane pack: 8 f32 / 16 bf16

    cap = _vmem_capacity_bytes()
    budget = max(cap - (12 << 20), 24 << 20)        # headroom for compiler scratch/DMA
    big_part = cap >= (96 << 20)                    # v5e/v6e 128 MiB vs v7x 64 MiB

    Hp = _round_up(H, 128)                          # lane-dense output (full vst)
    F128 = _round_up(F, 128)

    # --- M tile ---------------------------------------------------------------
    if tile_m is None:
        base = (512 if x_item <= 2 else 256) * (2 if big_part else 1)
        if M > 256 and _round_up(M, sub) <= base:
            # Keep >= 2 M tiles so both TensorCores get work on v7x megacore.
            tile_m = max(sub, _round_up(-(-M // 2), sub))
        else:
            tile_m = min(base, _round_up(M, sub))
    else:
        tile_m = min(tile_m, _round_up(M, sub))
    tile_m = max(sub, _round_up(tile_m, sub))

    def _need(tm, tk, gk_):
        need = 2 * tm * tk * x_item                              # x tile (dbl-buf)
        need += 2 * tm * Hp * x_item                             # out tile (dbl-buf)
        need += (1 if gk_ == 1 else 2) * tk * Hp * w_item        # w1 slab
        need += (Hp * Hp + 2 * Hp) * w_item                      # w2 + b1 + b2 (single-buf)
        if gk_ > 1:
            need += tm * Hp * 4                                  # f32 accumulator
        return need

    # --- K tile: prefer the full-F-resident w1 (single-K fast path) when it fits
    if tile_k is None:
        tile_k = F128 if _need(tile_m, F128, 1) <= budget else min(512, F128)
    else:
        tile_k = min(_round_up(tile_k, 128), F128)

    Fp = _round_up(F, tile_k)
    gk = Fp // tile_k

    # Over budget?  Actually shrink allocations (clamping the limit is not enough).
    while _need(tile_m, tile_k, gk) > budget and tile_m > max(sub, 128):
        tile_m = max(max(sub, 128), _round_up(tile_m // 2, sub))
    while _need(tile_m, tile_k, gk) > budget and tile_k > 128:
        tile_k = max(128, _round_up(tile_k // 2, 128))
        Fp = _round_up(F, tile_k)
        gk = Fp // tile_k
    # TODO(synk): for Hp so large that even a single-buffered resident w2 (Hp^2 bytes)
    # overflows v7x's 64 MiB VMEM, stream w2 from HBM in column slabs during the
    # epilogue (memory_space=pl.ANY + pltpu.make_async_copy) instead of holding it.

    Mp = _round_up(M, tile_m)
    gm = Mp // tile_m

    # --- pad only when actually needed (skip the padded-activation HBM round trip)
    x2 = caption.reshape(M, F)
    if Mp != M or Fp != F:
        x2 = jnp.pad(x2, ((0, Mp - M), (0, Fp - F)))
    w1_p = w1 if (Fp == F and Hp == H) else jnp.pad(w1, ((0, Fp - F), (0, Hp - H)))
    w2_p = w2 if Hp == H else jnp.pad(w2, ((0, Hp - H), (0, Hp - H)))
    b1_p = (b1 if Hp == H else jnp.pad(b1, (0, Hp - H))).reshape(1, Hp)
    b2_p = (b2 if Hp == H else jnp.pad(b2, (0, Hp - H))).reshape(1, Hp)

    need = _need(tile_m, tile_k, gk)
    vmem_limit = int(min(max(need + (4 << 20), 32 << 20), cap))

    cost = pl.CostEstimate(
        flops=2 * M * (F * H + H * H),
        transcendentals=M * H,
        bytes_accessed=(M * F * x_item + (F * H + H * H + 2 * H) * w_item
                        + M * H * x_item),
    )

    cast_dtype = None if mxu_dtype is None else jnp.dtype(mxu_dtype)
    if cast_dtype is not None and x_item <= cast_dtype.itemsize:
        cast_dtype = None                           # already that narrow (or narrower)

    const_buf = dict(pipeline_mode=pl.Buffered(1))  # constant index -> single buffer

    if gk == 1:
        kernel = functools.partial(_single_k_kernel, cast_dtype=cast_dtype)
        grid = (gm,)
        in_specs = [
            pl.BlockSpec((tile_m, tile_k), lambda i: (i, 0)),             # x tile
            pl.BlockSpec((tile_k, Hp), lambda i: (0, 0), **const_buf),    # w1 (resident)
            pl.BlockSpec((1, Hp), lambda i: (0, 0), **const_buf),         # b1
            pl.BlockSpec((Hp, Hp), lambda i: (0, 0), **const_buf),        # w2 (resident)
            pl.BlockSpec((1, Hp), lambda i: (0, 0), **const_buf),         # b2
        ]
        out_specs = pl.BlockSpec((tile_m, Hp), lambda i: (i, 0))
        scratch_shapes = []                          # no accumulator needed
        dims = ("parallel",)
    else:
        kernel = functools.partial(_multi_k_kernel, cast_dtype=cast_dtype)
        grid = (gm, gk)
        in_specs = [
            pl.BlockSpec((tile_m, tile_k), lambda i, k: (i, k)),          # x tile
            pl.BlockSpec((tile_k, Hp), lambda i, k: (k, 0)),              # w1 K-slab
            pl.BlockSpec((1, Hp), lambda i, k: (0, 0), **const_buf),      # b1
            pl.BlockSpec((Hp, Hp), lambda i, k: (0, 0), **const_buf),     # w2 (resident)
            pl.BlockSpec((1, Hp), lambda i, k: (0, 0), **const_buf),      # b2
        ]
        out_specs = pl.BlockSpec((tile_m, Hp), lambda i, k: (i, 0))
        scratch_shapes = [pltpu.VMEM((tile_m, Hp), jnp.float32)]          # f32 acc
        dims = ("parallel", "arbitrary")

    out_p = pl.pallas_call(
        kernel,
        out_shape=jax.ShapeDtypeStruct((Mp, Hp), caption.dtype),
        grid_spec=pltpu.PrefetchScalarGridSpec(
            num_scalar_prefetch=0,
            grid=grid,
            in_specs=in_specs,
            out_specs=out_specs,
            scratch_shapes=scratch_shapes,
        ),
        compiler_params=pltpu.CompilerParams(
            dimension_semantics=dims,
            vmem_limit_bytes=vmem_limit,
        ),
        cost_estimate=cost,
    )(x2, w1_p, b1_p, w2_p, b2_p)

    if Mp != M or Hp != H:
        out_p = out_p[:M, :H]
    return out_p.reshape(B, T, H)


def _reference(caption, w1, b1, w2, b2):
    x = caption.astype(jnp.float32)
    h = jnp.einsum("btf,fh->bth", x, w1.astype(jnp.float32)) + b1.astype(jnp.float32)
    g = 0.5 * h * (1.0 + jnp.tanh(_SQRT_2_OVER_PI * (h + 0.044715 * h ** 3)))
    out = jnp.einsum("bth,ho->bto", g, w2.astype(jnp.float32)) + b2.astype(jnp.float32)
    return out.astype(caption.dtype)


if __name__ == "__main__":
    # Small, deterministic configuration consistent with the module's forward
    # (CLIPProjection defaults num_tokens=120).
    B, T = 2, 120
    in_features = 32
    hidden_size = 32

    key = jax.random.PRNGKey(0)
    k_cap, k_w1, k_b1, k_w2, k_b2, k_cap2, k_w1b = jax.random.split(key, 7)

    caption = jax.random.normal(k_cap, (B, T, in_features), dtype=jnp.float32)

    bound1 = 1.0 / np.sqrt(in_features)
    w1 = jax.random.uniform(k_w1, (in_features, hidden_size),
                            minval=-bound1, maxval=bound1, dtype=jnp.float32)
    b1 = jax.random.uniform(k_b1, (hidden_size,),
                            minval=-bound1, maxval=bound1, dtype=jnp.float32)

    # (a) Module-faithful: linear_2 is zero_module()'d -> all zeros.
    #     Exercises the single-K fast path (no accumulator scratch).
    w2_zero = jnp.zeros((hidden_size, hidden_size), dtype=jnp.float32)
    b2_zero = jnp.zeros((hidden_size,), dtype=jnp.float32)
    out = jax.block_until_ready(clip_projection(caption, w1, b1, w2_zero, b2_zero))
    ref = _reference(caption, w1, b1, w2_zero, b2_zero)
    np.testing.assert_allclose(np.asarray(out), np.asarray(ref), atol=1e-5, rtol=1e-5)

    # (b) Non-zero linear_2, wider F with explicit tile_k so the multi-K accumulator
    #     path (gk=2) and ragged-M padding (240 -> 256) are exercised.
    F2 = 256
    cap2 = jax.random.normal(k_cap2, (B, T, F2), dtype=jnp.float32)
    bound1b = 1.0 / np.sqrt(F2)
    w1b = jax.random.uniform(k_w1b, (F2, hidden_size),
                             minval=-bound1b, maxval=bound1b, dtype=jnp.float32)
    bound2 = 1.0 / np.sqrt(hidden_size)
    w2 = jax.random.uniform(k_w2, (hidden_size, hidden_size),
                            minval=-bound2, maxval=bound2, dtype=jnp.float32)
    b2 = jax.random.uniform(k_b2, (hidden_size,),
                            minval=-bound2, maxval=bound2, dtype=jnp.float32)
    out2 = jax.block_until_ready(
        clip_projection(cap2, w1b, b1, w2, b2, tile_m=128, tile_k=128))
    ref2 = _reference(cap2, w1b, b1, w2, b2)
    np.testing.assert_allclose(np.asarray(out2), np.asarray(ref2), atol=1e-4, rtol=1e-5)

    # (c) bf16 inputs/weights: MXU-native operands with f32 accumulation.
    cap_bf = caption.astype(jnp.bfloat16)
    out3 = jax.block_until_ready(
        clip_projection(cap_bf, w1.astype(jnp.bfloat16), b1.astype(jnp.bfloat16),
                        w2.astype(jnp.bfloat16), b2.astype(jnp.bfloat16)))
    ref3 = _reference(cap_bf, w1.astype(jnp.bfloat16), b1.astype(jnp.bfloat16),
                      w2.astype(jnp.bfloat16), b2.astype(jnp.bfloat16))
    np.testing.assert_allclose(np.asarray(out3, dtype=np.float32),
                               np.asarray(ref3, dtype=np.float32),
                               atol=3e-2, rtol=5e-2)

    # (d) f32 inputs with the bf16 MXU-operand knob (full-rate MXU path).
    out4 = jax.block_until_ready(
        clip_projection(caption, w1, b1, w2, b2, mxu_dtype=jnp.bfloat16))
    ref4 = _reference(caption, w1, b1, w2, b2)
    np.testing.assert_allclose(np.asarray(out4), np.asarray(ref4),
                               atol=3e-2, rtol=5e-2)

    print("KERNEL_OK")
</pallas_src>

<mosaic_0001>
module attributes {stable_mosaic.version = 11 : i64} {
  func.func @_single_k_kernel(%arg0: i32, %arg1: memref<240x128xf32, #tpu.memory_space<vmem>>, %arg2: memref<128x128xf32, #tpu.memory_space<vmem>>, %arg3: memref<1x128xf32, #tpu.memory_space<vmem>>, %arg4: memref<128x128xf32, #tpu.memory_space<vmem>>, %arg5: memref<1x128xf32, #tpu.memory_space<vmem>>, %arg6: memref<240x128xf32, #tpu.memory_space<vmem>>) attributes {dimension_semantics = [#tpu.dimension_semantics<parallel>], iteration_bounds = array<i64: 1>, scalar_prefetch = 0 : i64, scratch_operands = 0 : i64, tpu.core_type = #tpu.core_type<tc>, window_params = [{transform_indices = @transform_0, window_bounds = array<i64: 240, 128>}, {pipeline_mode = #tpu.pipeline_mode<synchronous>, transform_indices = @transform_1, window_bounds = array<i64: 128, 128>}, {pipeline_mode = #tpu.pipeline_mode<synchronous>, transform_indices = @transform_2, window_bounds = array<i64: 1, 128>}, {pipeline_mode = #tpu.pipeline_mode<synchronous>, transform_indices = @transform_3, window_bounds = array<i64: 128, 128>}, {pipeline_mode = #tpu.pipeline_mode<synchronous>, transform_indices = @transform_4, window_bounds = array<i64: 1, 128>}, {transform_indices = @transform_5, window_bounds = array<i64: 240, 128>}]} {
    %c0 = arith.constant 0 : index
    %c0_0 = arith.constant 0 : index
    %0 = vector.load %arg1[%c0, %c0_0] : memref<240x128xf32, #tpu.memory_space<vmem>>, vector<240x128xf32>
    %c0_1 = arith.constant 0 : index
    %c0_2 = arith.constant 0 : index
    %1 = vector.load %arg2[%c0_1, %c0_2] : memref<128x128xf32, #tpu.memory_space<vmem>>, vector<128x128xf32>
    %cst = arith.constant dense<0.000000e+00> : vector<240x128xf32>
    %2 = tpu.matmul %0, %1, %cst {dimension_numbers = #tpu.dot_dimension_numbers<[1], [0], [0], [1], [0, 0, 1, 1], [], []>} : vector<240x128xf32>, vector<128x128xf32>, vector<240x128xf32> -> vector<240x128xf32>
    %c0_3 = arith.constant 0 : index
    %c0_4 = arith.constant 0 : index
    %3 = vector.load %arg3[%c0_3, %c0_4] : memref<1x128xf32, #tpu.memory_space<vmem>>, vector<1x128xf32>
    %4 = vector.broadcast %3 : vector<1x128xf32> to vector<240x128xf32>
    %5 = arith.addf %2, %4 : vector<240x128xf32>
    %cst_5 = arith.constant 5.000000e-01 : f32
    %6 = vector.broadcast %cst_5 : f32 to vector<240x128xf32>
    %7 = arith.mulf %6, %5 : vector<240x128xf32>
    %cst_6 = arith.constant 0.797884583 : f32
    %8 = vector.broadcast %cst_6 : f32 to vector<240x128xf32>
    %9 = arith.mulf %8, %5 : vector<240x128xf32>
    %cst_7 = arith.constant 4.471500e-02 : f32
    %10 = vector.broadcast %cst_7 : f32 to vector<240x128xf32>
    %11 = arith.mulf %10, %5 : vector<240x128xf32>
    %12 = arith.mulf %11, %5 : vector<240x128xf32>
    %cst_8 = arith.constant 1.000000e+00 : f32
    %13 = vector.broadcast %cst_8 : f32 to vector<240x128xf32>
    %14 = arith.addf %13, %12 : vector<240x128xf32>
    %15 = arith.mulf %9, %14 : vector<240x128xf32>
    %16 = math.tanh %15 : vector<240x128xf32>
    %cst_9 = arith.constant 1.000000e+00 : f32
    %17 = vector.broadcast %cst_9 : f32 to vector<240x128xf32>
    %18 = arith.addf %17, %16 : vector<240x128xf32>
    %19 = arith.mulf %7, %18 : vector<240x128xf32>
    %c0_10 = arith.constant 0 : index
    %c0_11 = arith.constant 0 : index
    %20 = vector.load %arg4[%c0_10, %c0_11] : memref<128x128xf32, #tpu.memory_space<vmem>>, vector<128x128xf32>
    %cst_12 = arith.constant dense<0.000000e+00> : vector<240x128xf32>
    %21 = tpu.matmul %19, %20, %cst_12 {dimension_numbers = #tpu.dot_dimension_numbers<[1], [0], [0], [1], [0, 0, 1, 1], [], []>} : vector<240x128xf32>, vector<128x128xf32>, vector<240x128xf32> -> vector<240x128xf32>
    %c0_13 = arith.constant 0 : index
    %c0_14 = arith.constant 0 : index
    %22 = vector.load %arg5[%c0_13, %c0_14] : memref<1x128xf32, #tpu.memory_space<vmem>>, vector<1x128xf32>
    %23 = vector.broadcast %22 : vector<1x128xf32> to vector<240x128xf32>
    %24 = arith.addf %21, %23 : vector<240x128xf32>
    %c0_15 = arith.constant 0 : index
    %c0_16 = arith.constant 0 : index
    %25 = vector.load %arg6[%c0_15, %c0_16] : memref<240x128xf32, #tpu.memory_space<vmem>>, vector<240x128xf32>
    tpu.vector_store %arg6[%c0_15, %c0_16], %24 {strides = array<i32>} : memref<240x128xf32, #tpu.memory_space<vmem>>, vector<240x128xf32>,
    return
  }
  func.func @transform_0(%arg0: i32) -> (i32, i32) {
    %c0_i32 = arith.constant 0 : i32
    %c0_i32_0 = arith.constant 0 : i32
    return %arg0, %c0_i32 : i32, i32
  }
  func.func @transform_1(%arg0: i32) -> (i32, i32) {
    %c0_i32 = arith.constant 0 : i32
    %c0_i32_0 = arith.constant 0 : i32
    %c0_i32_1 = arith.constant 0 : i32
    return %c0_i32, %c0_i32_0 : i32, i32
  }
  func.func @transform_2(%arg0: i32) -> (i32, i32) {
    %c0_i32 = arith.constant 0 : i32
    %c0_i32_0 = arith.constant 0 : i32
    %c0_i32_1 = arith.constant 0 : i32
    return %c0_i32, %c0_i32_0 : i32, i32
  }
  func.func @transform_3(%arg0: i32) -> (i32, i32) {
    %c0_i32 = arith.constant 0 : i32
    %c0_i32_0 = arith.constant 0 : i32
    %c0_i32_1 = arith.constant 0 : i32
    return %c0_i32, %c0_i32_0 : i32, i32
  }
  func.func @transform_4(%arg0: i32) -> (i32, i32) {
    %c0_i32 = arith.constant 0 : i32
    %c0_i32_0 = arith.constant 0 : i32
    %c0_i32_1 = arith.constant 0 : i32
    return %c0_i32, %c0_i32_0 : i32, i32
  }
  func.func @transform_5(%arg0: i32) -> (i32, i32) {
    %c0_i32 = arith.constant 0 : i32
    %c0_i32_0 = arith.constant 0 : i32
    return %arg0, %c0_i32 : i32, i32
  }
}

</mosaic_0001>

<llo_original>
// kernel: clip_projection.1
$region0: #{clip_projection.1}
  #allocation0 [shape = 'u32[]', space=smem, size = 0x4, offset = 0x4, fixed_abs, tag = 'smem constant byte address 0x4 - core index']
  #allocation1 [shape = 'u32[144,128]{1,0:T(1,128)}', space=vmem, size = 0x12000, scoped, tag = 'internal scratch']
  %s0 = inlined_call_operand.vmem [shape: f32[240,128], index: 0, kind: input, shape index: {}]
  %s1 = inlined_call_operand.vmem [shape: f32[128,128], index: 1, kind: input, shape index: {}]
  %s2 = inlined_call_operand.vmem [shape: f32[1,128], index: 2, kind: input, shape index: {}]
  %s3 = inlined_call_operand.vmem [shape: f32[128,128], index: 3, kind: input, shape index: {}]
  %s4 = inlined_call_operand.vmem [shape: f32[1,128], index: 4, kind: input, shape index: {}]
  %s5 = inlined_call_operand.vmem [shape: f32[240,128], index: 5, kind: output, shape index: {}]
  %s6 = sld [smem:[#allocation0]]
  $region30: #{clip_projection.1} parent=0
    _
  %s8 = ssub.s32 1, %s6
  %s9 = scalar_select 0, %s8, %s6
  // Predicated region
  $region2: #{clip_projection.1} parent=0 // pred_check
    _
  $region3: #{clip_projection.1} parent=0 // pred_check_branch
    %11 = sbr.rel (0) target = $region5
  $region4: #{clip_projection.1} parent=0 // pred_region
    _
  $region5: #{clip_projection.1} parent=0 // pred_fallthru
    _
  // Predicated region
  $region6: #{clip_projection.1} parent=0 // pred_check
    _
  $region7: #{clip_projection.1} parent=0 // pred_check_branch
    %13 = sbr.rel (0) target = $region9
  $region8: #{clip_projection.1} parent=0 // pred_region
    _
  $region9: #{clip_projection.1} parent=0 // pred_fallthru
    _
  // Predicated region
  $region10: #{clip_projection.1} parent=0 // pred_check
    _
  $region11: #{clip_projection.1} parent=0 // pred_check_branch
    %15 = sbr.rel (0) target = $region13
  $region12: #{clip_projection.1} parent=0 // pred_region
    _
  $region13: #{clip_projection.1} parent=0 // pred_fallthru
    _
  // Predicated region
  $region14: #{clip_projection.1} parent=0 // pred_check
    _
  $region15: #{clip_projection.1} parent=0 // pred_check_branch
    %17 = sbr.rel (0) target = $region17
  $region16: #{clip_projection.1} parent=0 // pred_region
    _
  $region17: #{clip_projection.1} parent=0 // pred_fallthru
    _
  // Predicated region
  $region18: #{clip_projection.1} parent=0 // pred_check
    _
  $region19: #{clip_projection.1} parent=0 // pred_check_branch
    %19 = sbr.rel (0) target = $region21
  $region20: #{clip_projection.1} parent=0 // pred_region
    _
  $region21: #{clip_projection.1} parent=0 // pred_fallthru
    _
  %v20 = vld [vmem:[%s0] sm:$0xff]
  %v21 = vld [vmem:[%s0 + $0x8] sm:$0xff]
  %v22 = vld [vmem:[%s0 + $0x10] sm:$0xff]
  %v23 = vld [vmem:[%s0 + $0x18] sm:$0xff]
  %v24 = vld [vmem:[%s0 + $0x20] sm:$0xff]
  %v25 = vld [vmem:[%s0 + $0x28] sm:$0xff]
  %v26 = vld [vmem:[%s0 + $0x30] sm:$0xff]
  %v27 = vld [vmem:[%s0 + $0x38] sm:$0xff]
  %v28 = vld [vmem:[%s0 + $0x40] sm:$0xff]
  %v29 = vld [vmem:[%s0 + $0x48] sm:$0xff]
  %v30 = vld [vmem:[%s0 + $0x50] sm:$0xff]
  %v31 = vld [vmem:[%s0 + $0x58] sm:$0xff]
  %v32 = vld [vmem:[%s0 + $0x60] sm:$0xff]
  %v33 = vld [vmem:[%s0 + $0x68] sm:$0xff]
  %v34 = vld [vmem:[%s0 + $0x70] sm:$0xff]
  %v35 = vld [vmem:[%s0 + $0x78] sm:$0xff]
  %v36 = vld [vmem:[%s0 + $0x80] sm:$0xff]
  %v37 = vld [vmem:[%s0 + $0x88] sm:$0xff]
  %v38 = vld [vmem:[%s0 + $0x90] sm:$0xff]
  %v39 = vld [vmem:[%s0 + $0x98] sm:$0xff]
  %v40 = vld [vmem:[%s0 + $0xa0] sm:$0xff]
  %v41 = vld [vmem:[%s0 + $0xa8] sm:$0xff]
  %v42 = vld [vmem:[%s0 + $0xb0] sm:$0xff]
  %v43 = vld [vmem:[%s0 + $0xb8] sm:$0xff]
  %v44 = vld [vmem:[%s0 + $0xc0] sm:$0xff]
  %v45 = vld [vmem:[%s0 + $0xc8] sm:$0xff]
  %v46 = vld [vmem:[%s0 + $0xd0] sm:$0xff]
  %v47 = vld [vmem:[%s0 + $0xd8] sm:$0xff]
  %v48 = vld [vmem:[%s0 + $0xe0] sm:$0xff]
  %v49 = vld [vmem:[%s0 + $0xe8] sm:$0xff]
  %v50 = vld [vmem:[%s1] sm:$0xff]
  %v51 = vld [vmem:[%s1 + $0x8] sm:$0xff]
  %v52 = vld [vmem:[%s1 + $0x10] sm:$0xff]
  %v53 = vld [vmem:[%s1 + $0x18] sm:$0xff]
  %v54 = vld [vmem:[%s1 + $0x20] sm:$0xff]
  %v55 = vld [vmem:[%s1 + $0x28] sm:$0xff]
  %v56 = vld [vmem:[%s1 + $0x30] sm:$0xff]
  %v57 = vld [vmem:[%s1 + $0x38] sm:$0xff]
  %v58 = vld [vmem:[%s1 + $0x40] sm:$0xff]
  %v59 = vld [vmem:[%s1 + $0x48] sm:$0xff]
  %v60 = vld [vmem:[%s1 + $0x50] sm:$0xff]
  %v61 = vld [vmem:[%s1 + $0x58] sm:$0xff]
  %v62 = vld [vmem:[%s1 + $0x60] sm:$0xff]
  %v63 = vld [vmem:[%s1 + $0x68] sm:$0xff]
  %v64 = vld [vmem:[%s1 + $0x70] sm:$0xff]
  %v65 = vld [vmem:[%s1 + $0x78] sm:$0xff]
  %v66 = vld [vmem:[%s2] sm:$0x1]
  %v68 = vlaneseq
  %v69 = vshrl.u32 %v68, 7
  %v70 = vsub.s32 0, %v69
  %v71 = vrot.slane %v66, %v70
  %73 = vmatprep.subr.mxu0 0.0
  %74 = vmatpush1.msra.mxu0 %v50
  %75 = vmatprep.subr.mxu0 0.0
  %76 = vmatpush1.msra.mxu0 %v51
  %77 = vmatprep.subr.mxu0 0.0
  %78 = vmatpush1.msra.mxu0 %v52
  %79 = vmatprep.subr.mxu0 0.0
  %80 = vmatpush1.msra.mxu0 %v53
  %81 = vmatprep.subr.mxu0 0.0
  %82 = vmatpush1.msra.mxu0 %v54
  %83 = vmatprep.subr.mxu0 0.0
  %84 = vmatpush1.msra.mxu0 %v55
  %85 = vmatprep.subr.mxu0 0.0
  %86 = vmatpush1.msra.mxu0 %v56
  %87 = vmatprep.subr.mxu0 0.0
  %88 = vmatpush1.msra.mxu0 %v57
  %89 = vmatprep.subr.mxu0 0.0
  %90 = vmatpush1.msra.mxu0 %v58
  %91 = vmatprep.subr.mxu0 0.0
  %92 = vmatpush1.msra.mxu0 %v59
  %93 = vmatprep.subr.mxu0 0.0
  %94 = vmatpush1.msra.mxu0 %v60
  %95 = vmatprep.subr.mxu0 0.0
  %96 = vmatpush1.msra.mxu0 %v61
  %97 = vmatprep.subr.mxu0 0.0
  %98 = vmatpush1.msra.mxu0 %v62
  %99 = vmatprep.subr.mxu0 0.0
  %100 = vmatpush1.msra.mxu0 %v63
  %101 = vmatprep.subr.mxu0 0.0
  %102 = vmatpush1.msra.mxu0 %v64
  %103 = vmatprep.subr.mxu0 0.0
  %104 = vmatpush1.msra.mxu0 %v65
  %105 = vmatprep.subr.mxu0 0.0
  %106 = vmatpush1.msra.mxu0 0.0
  %107 = vmatprep.subr.mxu0 0.0
  %108 = vmatpush1.msra.mxu0 0.0
  %109 = vmatprep.subr.mxu0 0.0
  %110 = vmatpush1.msra.mxu0 0.0
  %111 = vmatprep.subr.mxu0 0.0
  %112 = vmatpush1.msra.mxu0 0.0
  %113 = vmatprep.subr.mxu0 0.0
  %114 = vmatpush1.msra.mxu0 0.0
  %115 = vmatprep.subr.mxu0 0.0
  %116 = vmatpush1.msra.mxu0 0.0
  %117 = vmatprep.subr.mxu0 0.0
  %118 = vmatpush1.msra.mxu0 0.0
  %119 = vmatprep.subr.mxu0 0.0
  %120 = vmatpush1.msra.mxu0 0.0
  %121 = vmatprep.subr.mxu0 0.0
  %122 = vmatpush1.msra.mxu0 0.0
  %123 = vmatprep.subr.mxu0 0.0
  %124 = vmatpush1.msra.mxu0 0.0
  %125 = vmatprep.subr.mxu0 0.0
  %126 = vmatpush1.msra.mxu0 0.0
  %127 = vmatprep.subr.mxu0 0.0
  %128 = vmatpush1.msra.mxu0 0.0
  %129 = vmatprep.subr.mxu0 0.0
  %130 = vmatpush1.msra.mxu0 0.0
  %131 = vmatprep.subr.mxu0 0.0
  %132 = vmatpush1.msra.mxu0 0.0
  %133 = vmatprep.subr.mxu0 0.0
  %134 = vmatpush1.msra.mxu0 0.0
  %135 = vmatprep.subr.mxu0 0.0
  %136 = vmatpush1.msra.mxu0 0.0
  %137 = vmatprep.mubr.f32.mxu0 0.0
  %138 = vmatmul.mubr.f32.gmra.mrb[0].mxu0 %v20
  %v139 = vpop.f32.mrb[0].mxu0
  %v140 = vadd.f32 %v71, %v139
  %v141 = vpop.f32.mrb[0].mxu0
  %142 = vmatprep.mubr.f32.mxu0 0.0
  %143 = vmatmul.mubr.f32.gmra.mrb[0].mxu0 %v21
  %v144 = vpop.f32.mrb[0].mxu0
  %v145 = vadd.f32 %v71, %v144
  %v146 = vpop.f32.mrb[0].mxu0
  %147 = vmatprep.mubr.f32.mxu0 0.0
  %148 = vmatmul.mubr.f32.gmra.mrb[0].mxu0 %v22
  %v149 = vpop.f32.mrb[0].mxu0
  %v150 = vadd.f32 %v71, %v149
  %v151 = vpop.f32.mrb[0].mxu0
  %152 = vmatprep.mubr.f32.mxu0 0.0
  %153 = vmatmul.mubr.f32.gmra.mrb[0].mxu0 %v23
  %v154 = vpop.f32.mrb[0].mxu0
  %v155 = vadd.f32 %v71, %v154
  %v156 = vpop.f32.mrb[0].mxu0
  %157 = vmatprep.mubr.f32.mxu0 0.0
  %158 = vmatmul.mubr.f32.gmra.mrb[0].mxu0 %v24
  %v159 = vpop.f32.mrb[0].mxu0
  %v160 = vadd.f32 %v71, %v159
  %v161 = vpop.f32.mrb[0].mxu0
  %162 = vmatprep.mubr.f32.mxu0 0.0
  %163 = vmatmul.mubr.f32.gmra.mrb[0].mxu0 %v25
  %v164 = vpop.f32.mrb[0].mxu0
  %v165 = vadd.f32 %v71, %v164
  %v166 = vpop.f32.mrb[0].mxu0
  %167 = vmatprep.mubr.f32.mxu0 0.0
  %168 = vmatmul.mubr.f32.gmra.mrb[0].mxu0 %v26
  %v169 = vpop.f32.mrb[0].mxu0
  %v170 = vadd.f32 %v71, %v169
  %v171 = vpop.f32.mrb[0].mxu0
  %172 = vmatprep.mubr.f32.mxu0 0.0
  %173 = vmatmul.mubr.f32.gmra.mrb[0].mxu0 %v27
  %v174 = vpop.f32.mrb[0].mxu0
  %v175 = vadd.f32 %v71, %v174
  %v176 = vpop.f32.mrb[0].mxu0
  %177 = vmatprep.mubr.f32.mxu0 0.0
  %178 = vmatmul.mubr.f32.gmra.mrb[0].mxu0 %v28
  %v179 = vpop.f32.mrb[0].mxu0
  %v180 = vadd.f32 %v71, %v179
  %v181 = vpop.f32.mrb[0].mxu0
  %182 = vmatprep.mubr.f32.mxu0 0.0
  %183 = vmatmul.mubr.f32.gmra.mrb[0].mxu0 %v29
  %v184 = vpop.f32.mrb[0].mxu0
  %v185 = vadd.f32 %v71, %v184
  %v186 = vpop.f32.mrb[0].mxu0
  %187 = vmatprep.mubr.f32.mxu0 0.0
  %188 = vmatmul.mubr.f32.gmra.mrb[0].mxu0 %v30
  %v189 = vpop.f32.mrb[0].mxu0
  %v190 = vadd.f32 %v71, %v189
  %v191 = vpop.f32.mrb[0].mxu0
  %192 = vmatprep.mubr.f32.mxu0 0.0
  %193 = vmatmul.mubr.f32.gmra.mrb[0].mxu0 %v31
  %v194 = vpop.f32.mrb[0].mxu0
  %v195 = vadd.f32 %v71, %v194
  %v196 = vpop.f32.mrb[0].mxu0
  %197 = vmatprep.mubr.f32.mxu0 0.0
  %198 = vmatmul.mubr.f32.gmra.mrb[0].mxu0 %v32
  %v199 = vpop.f32.mrb[0].mxu0
  %v200 = vadd.f32 %v71, %v199
  %v201 = vpop.f32.mrb[0].mxu0
  %202 = vmatprep.mubr.f32.mxu0 0.0
  %203 = vmatmul.mubr.f32.gmra.mrb[0].mxu0 %v33
  %v204 = vpop.f32.mrb[0].mxu0
  %v205 = vadd.f32 %v71, %v204
  %v206 = vpop.f32.mrb[0].mxu0
  %207 = vmatprep.mubr.f32.mxu0 0.0
  %208 = vmatmul.mubr.f32.gmra.mrb[0].mxu0 %v34
  %v209 = vpop.f32.mrb[0].mxu0
  %v210 = vadd.f32 %v71, %v209
  %v211 = vpop.f32.mrb[0].mxu0
  %212 = vmatprep.mubr.f32.mxu0 0.0
  %213 = vmatmul.mubr.f32.gmra.mrb[0].mxu0 %v35
  %v214 = vpop.f32.mrb[0].mxu0
  %v215 = vadd.f32 %v71, %v214
  %v216 = vpop.f32.mrb[0].mxu0
  %217 = vmatprep.mubr.f32.mxu0 0.0
  %218 = vmatmul.mubr.f32.gmra.mrb[0].mxu0 %v36
  %v219 = vpop.f32.mrb[0].mxu0
  %v220 = vadd.f32 %v71, %v219
  %v221 = vpop.f32.mrb[0].mxu0
  %222 = vmatprep.mubr.f32.mxu0 0.0
  %223 = vmatmul.mubr.f32.gmra.mrb[0].mxu0 %v37
  %v224 = vpop.f32.mrb[0].mxu0
  %v225 = vadd.f32 %v71, %v224
  %v226 = vpop.f32.mrb[0].mxu0
  %227 = vmatprep.mubr.f32.mxu0 0.0
  %228 = vmatmul.mubr.f32.gmra.mrb[0].mxu0 %v38
  %v229 = vpop.f32.mrb[0].mxu0
  %v230 = vadd.f32 %v71, %v229
  %v231 = vpop.f32.mrb[0].mxu0
  %232 = vmatprep.mubr.f32.mxu0 0.0
  %233 = vmatmul.mubr.f32.gmra.mrb[0].mxu0 %v39
  %v234 = vpop.f32.mrb[0].mxu0
  %v235 = vadd.f32 %v71, %v234
  %v236 = vpop.f32.mrb[0].mxu0
  %237 = vmatprep.mubr.f32.mxu0 0.0
  %238 = vmatmul.mubr.f32.gmra.mrb[0].mxu0 %v40
  %v239 = vpop.f32.mrb[0].mxu0
  %v240 = vadd.f32 %v71, %v239
  %v241 = vpop.f32.mrb[0].mxu0
  %242 = vmatprep.mubr.f32.mxu0 0.0
  %243 = vmatmul.mubr.f32.gmra.mrb[0].mxu0 %v41
  %v244 = vpop.f32.mrb[0].mxu0
  %v245 = vadd.f32 %v71, %v244
  %v246 = vpop.f32.mrb[0].mxu0
  %247 = vmatprep.mubr.f32.mxu0 0.0
  %248 = vmatmul.mubr.f32.gmra.mrb[0].mxu0 %v42
  %v249 = vpop.f32.mrb[0].mxu0
  %v250 = vadd.f32 %v71, %v249
  %v251 = vpop.f32.mrb[0].mxu0
  %252 = vmatprep.mubr.f32.mxu0 0.0
  %253 = vmatmul.mubr.f32.gmra.mrb[0].mxu0 %v43
  %v254 = vpop.f32.mrb[0].mxu0
  %v255 = vadd.f32 %v71, %v254
  %v256 = vpop.f32.mrb[0].mxu0
  %257 = vmatprep.mubr.f32.mxu0 0.0
  %258 = vmatmul.mubr.f32.gmra.mrb[0].mxu0 %v44
  %v259 = vpop.f32.mrb[0].mxu0
  %v260 = vadd.f32 %v71, %v259
  %v261 = vpop.f32.mrb[0].mxu0
  %262 = vmatprep.mubr.f32.mxu0 0.0
  %263 = vmatmul.mubr.f32.gmra.mrb[0].mxu0 %v45
  %v264 = vpop.f32.mrb[0].mxu0
  %v265 = vadd.f32 %v71, %v264
  %v266 = vpop.f32.mrb[0].mxu0
  %267 = vmatprep.mubr.f32.mxu0 0.0
  %268 = vmatmul.mubr.f32.gmra.mrb[0].mxu0 %v46
  %v269 = vpop.f32.mrb[0].mxu0
  %v270 = vadd.f32 %v71, %v269
  %v271 = vpop.f32.mrb[0].mxu0
  %272 = vmatprep.mubr.f32.mxu0 0.0
  %273 = vmatmul.mubr.f32.gmra.mrb[0].mxu0 %v47
  %v274 = vpop.f32.mrb[0].mxu0
  %v275 = vadd.f32 %v71, %v274
  %v276 = vpop.f32.mrb[0].mxu0
  %277 = vmatprep.mubr.f32.mxu0 0.0
  %278 = vmatmul.mubr.f32.gmra.mrb[0].mxu0 %v48
  %v279 = vpop.f32.mrb[0].mxu0
  %v280 = vadd.f32 %v71, %v279
  %v281 = vpop.f32.mrb[0].mxu0
  %282 = vmatprep.mubr.f32.mxu0 0.0
  %283 = vmatmul.mubr.f32.gmra.mrb[0].mxu0 %v49
  %v284 = vpop.f32.mrb[0].mxu0
  %v285 = vadd.f32 %v71, %v284
  %v286 = vpop.f32.mrb[0].mxu0
  %287 = vdwg.mxu0
  %v288 = vmul.f32 %v140, 0.5
  %v289 = vmul.f32 %v145, 0.5
  %v290 = vmul.f32 %v150, 0.5
  %v291 = vmul.f32 %v155, 0.5
  %v292 = vmul.f32 %v160, 0.5
  %v293 = vmul.f32 %v165, 0.5
  %v294 = vmul.f32 %v170, 0.5
  %v295 = vmul.f32 %v175, 0.5
  %v296 = vmul.f32 %v180, 0.5
  %v297 = vmul.f32 %v185, 0.5
  %v298 = vmul.f32 %v190, 0.5
  %v299 = vmul.f32 %v195, 0.5
  %v300 = vmul.f32 %v200, 0.5
  %v301 = vmul.f32 %v205, 0.5
  %v302 = vmul.f32 %v210, 0.5
  %v303 = vmul.f32 %v215, 0.5
  %v304 = vmul.f32 %v220, 0.5
  %v305 = vmul.f32 %v225, 0.5
  %v306 = vmul.f32 %v230, 0.5
  %v307 = vmul.f32 %v235, 0.5
  %v308 = vmul.f32 %v240, 0.5
  %v309 = vmul.f32 %v245, 0.5
  %v310 = vmul.f32 %v250, 0.5
  %v311 = vmul.f32 %v255, 0.5
  %v312 = vmul.f32 %v260, 0.5
  %v313 = vmul.f32 %v265, 0.5
  %v314 = vmul.f32 %v270, 0.5
  %v315 = vmul.f32 %v275, 0.5
  %v316 = vmul.f32 %v280, 0.5
  %v317 = vmul.f32 %v285, 0.5
  %v318 = vmul.f32 %v140, 0.7978846
  %v319 = vmul.f32 %v145, 0.7978846
  %v320 = vmul.f32 %v150, 0.7978846
  %v321 = vmul.f32 %v155, 0.7978846
  %v322 = vmul.f32 %v160, 0.7978846
  %v323 = vmul.f32 %v165, 0.7978846
  %v324 = vmul.f32 %v170, 0.7978846
  %v325 = vmul.f32 %v175, 0.7978846
  %v326 = vmul.f32 %v180, 0.7978846
  %v327 = vmul.f32 %v185, 0.7978846
  %v328 = vmul.f32 %v190, 0.7978846
  %v329 = vmul.f32 %v195, 0.7978846
  %v330 = vmul.f32 %v200, 0.7978846
  %v331 = vmul.f32 %v205, 0.7978846
  %v332 = vmul.f32 %v210, 0.7978846
  %v333 = vmul.f32 %v215, 0.7978846
  %v334 = vmul.f32 %v220, 0.7978846
  %v335 = vmul.f32 %v225, 0.7978846
  %v336 = vmul.f32 %v230, 0.7978846
  %v337 = vmul.f32 %v235, 0.7978846
  %v338 = vmul.f32 %v240, 0.7978846
  %v339 = vmul.f32 %v245, 0.7978846
  %v340 = vmul.f32 %v250, 0.7978846
  %v341 = vmul.f32 %v255, 0.7978846
  %v342 = vmul.f32 %v260, 0.7978846
  %v343 = vmul.f32 %v265, 0.7978846
  %v344 = vmul.f32 %v270, 0.7978846
  %v345 = vmul.f32 %v275, 0.7978846
  %v346 = vmul.f32 %v280, 0.7978846
  %v347 = vmul.f32 %v285, 0.7978846
  %v348 = vmul.f32 %v140, 0.044715
  %v349 = vmul.f32 %v145, 0.044715
  %v350 = vmul.f32 %v150, 0.044715
  %v351 = vmul.f32 %v155, 0.044715
  %v352 = vmul.f32 %v160, 0.044715
  %v353 = vmul.f32 %v165, 0.044715
  %v354 = vmul.f32 %v170, 0.044715
  %v355 = vmul.f32 %v175, 0.044715
  %v356 = vmul.f32 %v180, 0.044715
  %v357 = vmul.f32 %v185, 0.044715
  %v358 = vmul.f32 %v190, 0.044715
  %v359 = vmul.f32 %v195, 0.044715
  %v360 = vmul.f32 %v200, 0.044715
  %v361 = vmul.f32 %v205, 0.044715
  %v362 = vmul.f32 %v210, 0.044715
  %v363 = vmul.f32 %v215, 0.044715
  %v364 = vmul.f32 %v220, 0.044715
  %v365 = vmul.f32 %v225, 0.044715
  %v366 = vmul.f32 %v230, 0.044715
  %v367 = vmul.f32 %v235, 0.044715
  %v368 = vmul.f32 %v240, 0.044715
  %v369 = vmul.f32 %v245, 0.044715
  %v370 = vmul.f32 %v250, 0.044715
  %v371 = vmul.f32 %v255, 0.044715
  %v372 = vmul.f32 %v260, 0.044715
  %v373 = vmul.f32 %v265, 0.044715
  %v374 = vmul.f32 %v270, 0.044715
  %v375 = vmul.f32 %v275, 0.044715
  %v376 = vmul.f32 %v280, 0.044715
  %v377 = vmul.f32 %v285, 0.044715
  %v378 = vmul.f32 %v348, %v140
  %v379 = vmul.f32 %v349, %v145
  %v380 = vmul.f32 %v350, %v150
  %v381 = vmul.f32 %v351, %v155
  %v382 = vmul.f32 %v352, %v160
  %v383 = vmul.f32 %v353, %v165
  %v384 = vmul.f32 %v354, %v170
  %v385 = vmul.f32 %v355, %v175
  %v386 = vmul.f32 %v356, %v180
  %v387 = vmul.f32 %v357, %v185
  %v388 = vmul.f32 %v358, %v190
  %v389 = vmul.f32 %v359, %v195
  %v390 = vmul.f32 %v360, %v200
  %v391 = vmul.f32 %v361, %v205
  %v392 = vmul.f32 %v362, %v210
  %v393 = vmul.f32 %v363, %v215
  %v394 = vmul.f32 %v364, %v220
  %v395 = vmul.f32 %v365, %v225
  %v396 = vmul.f32 %v366, %v230
  %v397 = vmul.f32 %v367, %v235
  %v398 = vmul.f32 %v368, %v240
  %v399 = vmul.f32 %v369, %v245
  %v400 = vmul.f32 %v370, %v250
  %v401 = vmul.f32 %v371, %v255
  %v402 = vmul.f32 %v372, %v260
  %v403 = vmul.f32 %v373, %v265
  %v404 = vmul.f32 %v374, %v270
  %v405 = vmul.f32 %v375, %v275
  %v406 = vmul.f32 %v376, %v280
  %v407 = vmul.f32 %v377, %v285
  %v408 = vadd.f32 %v378, 1.0
  %v409 = vadd.f32 %v379, 1.0
  %v410 = vadd.f32 %v380, 1.0
  %v411 = vadd.f32 %v381, 1.0
  %v412 = vadd.f32 %v382, 1.0
  %v413 = vadd.f32 %v383, 1.0
  %v414 = vadd.f32 %v384, 1.0
  %v415 = vadd.f32 %v385, 1.0
  %v416 = vadd.f32 %v386, 1.0
  %v417 = vadd.f32 %v387, 1.0
  %v418 = vadd.f32 %v388, 1.0
  %v419 = vadd.f32 %v389, 1.0
  %v420 = vadd.f32 %v390, 1.0
  %v421 = vadd.f32 %v391, 1.0
  %v422 = vadd.f32 %v392, 1.0
  %v423 = vadd.f32 %v393, 1.0
  %v424 = vadd.f32 %v394, 1.0
  %v425 = vadd.f32 %v395, 1.0
  %v426 = vadd.f32 %v396, 1.0
  %v427 = vadd.f32 %v397, 1.0
  %v428 = vadd.f32 %v398, 1.0
  %v429 = vadd.f32 %v399, 1.0
  %v430 = vadd.f32 %v400, 1.0
  %v431 = vadd.f32 %v401, 1.0
  %v432 = vadd.f32 %v402, 1.0
  %v433 = vadd.f32 %v403, 1.0
  %v434 = vadd.f32 %v404, 1.0
  %v435 = vadd.f32 %v405, 1.0
  %v436 = vadd.f32 %v406, 1.0
  %v437 = vadd.f32 %v407, 1.0
  %v438 = vmul.f32 %v318, %v408
  %v439 = vmul.f32 %v319, %v409
  %v440 = vmul.f32 %v320, %v410
  %v441 = vmul.f32 %v321, %v411
  %v442 = vmul.f32 %v322, %v412
  %v443 = vmul.f32 %v323, %v413
  %v444 = vmul.f32 %v324, %v414
  %v445 = vmul.f32 %v325, %v415
  %v446 = vmul.f32 %v326, %v416
  %v447 = vmul.f32 %v327, %v417
  %v448 = vmul.f32 %v328, %v418
  %v449 = vmul.f32 %v329, %v419
  %v450 = vmul.f32 %v330, %v420
  %v451 = vmul.f32 %v331, %v421
  %v452 = vmul.f32 %v332, %v422
  %v453 = vmul.f32 %v333, %v423
  %v454 = vmul.f32 %v334, %v424
  %v455 = vmul.f32 %v335, %v425
  %v456 = vmul.f32 %v336, %v426
  %v457 = vmul.f32 %v337, %v427
  %v458 = vmul.f32 %v338, %v428
  %v459 = vmul.f32 %v339, %v429
  %v460 = vmul.f32 %v340, %v430
  %v461 = vmul.f32 %v341, %v431
  %v462 = vmul.f32 %v342, %v432
  %v463 = vmul.f32 %v343, %v433
  %v464 = vmul.f32 %v344, %v434
  %v465 = vmul.f32 %v345, %v435
  %v466 = vmul.f32 %v346, %v436
  %v467 = vmul.f32 %v347, %v437
  %v468 = vtanh.pop %v438
  %v469 = vtanh.pop %v439
  %v470 = vtanh.pop %v440
  %v471 = vtanh.pop %v441
  %v472 = vtanh.pop %v442
  %v473 = vtanh.pop %v443
  %v474 = vtanh.pop %v444
  %v475 = vtanh.pop %v445
  %v476 = vtanh.pop %v446
  %v477 = vtanh.pop %v447
  %v478 = vtanh.pop %v448
  %v479 = vtanh.pop %v449
  %v480 = vtanh.pop %v450
  %v481 = vtanh.pop %v451
  %v482 = vtanh.pop %v452
  %v483 = vtanh.pop %v453
  %v484 = vtanh.pop %v454
  %v485 = vtanh.pop %v455
  %v486 = vtanh.pop %v456
  %v487 = vtanh.pop %v457
  %v488 = vtanh.pop %v458
  %v489 = vtanh.pop %v459
  %v490 = vtanh.pop %v460
  %v491 = vtanh.pop %v461
  %v492 = vtanh.pop %v462
  %v493 = vtanh.pop %v463
  %v494 = vtanh.pop %v464
  %v495 = vtanh.pop %v465
  %v496 = vtanh.pop %v466
  %v497 = vtanh.pop %v467
  %v498 = vadd.f32 %v468, 1.0
  %v499 = vadd.f32 %v469, 1.0
  %v500 = vadd.f32 %v470, 1.0
  %v501 = vadd.f32 %v471, 1.0
  %v502 = vadd.f32 %v472, 1.0
  %v503 = vadd.f32 %v473, 1.0
  %v504 = vadd.f32 %v474, 1.0
  %v505 = vadd.f32 %v475, 1.0
  %v506 = vadd.f32 %v476, 1.0
  %v507 = vadd.f32 %v477, 1.0
  %v508 = vadd.f32 %v478, 1.0
  %v509 = vadd.f32 %v479, 1.0
  %v510 = vadd.f32 %v480, 1.0
  %v511 = vadd.f32 %v481, 1.0
  %v512 = vadd.f32 %v482, 1.0
  %v513 = vadd.f32 %v483, 1.0
  %v514 = vadd.f32 %v484, 1.0
  %v515 = vadd.f32 %v485, 1.0
  %v516 = vadd.f32 %v486, 1.0
  %v517 = vadd.f32 %v487, 1.0
  %v518 = vadd.f32 %v488, 1.0
  %v519 = vadd.f32 %v489, 1.0
  %v520 = vadd.f32 %v490, 1.0
  %v521 = vadd.f32 %v491, 1.0
  %v522 = vadd.f32 %v492, 1.0
  %v523 = vadd.f32 %v493, 1.0
  %v524 = vadd.f32 %v494, 1.0
  %v525 = vadd.f32 %v495, 1.0
  %v526 = vadd.f32 %v496, 1.0
  %v527 = vadd.f32 %v497, 1.0
  %v528 = vmul.f32 %v288, %v498
  %v529 = vmul.f32 %v289, %v499
  %v530 = vmul.f32 %v290, %v500
  %v531 = vmul.f32 %v291, %v501
  %v532 = vmul.f32 %v292, %v502
  %v533 = vmul.f32 %v293, %v503
  %v534 = vmul.f32 %v294, %v504
  %v535 = vmul.f32 %v295, %v505
  %v536 = vmul.f32 %v296, %v506
  %v537 = vmul.f32 %v297, %v507
  %v538 = vmul.f32 %v298, %v508
  %v539 = vmul.f32 %v299, %v509
  %v540 = vmul.f32 %v300, %v510
  %v541 = vmul.f32 %v301, %v511
  %v542 = vmul.f32 %v302, %v512
  %v543 = vmul.f32 %v303, %v513
  %v544 = vmul.f32 %v304, %v514
  %v545 = vmul.f32 %v305, %v515
  %v546 = vmul.f32 %v306, %v516
  %v547 = vmul.f32 %v307, %v517
  %v548 = vmul.f32 %v308, %v518
  %v549 = vmul.f32 %v309, %v519
  %v550 = vmul.f32 %v310, %v520
  %v551 = vmul.f32 %v311, %v521
  %v552 = vmul.f32 %v312, %v522
  %v553 = vmul.f32 %v313, %v523
  %v554 = vmul.f32 %v314, %v524
  %v555 = vmul.f32 %v315, %v525
  %v556 = vmul.f32 %v316, %v526
  %v557 = vmul.f32 %v317, %v527
  %v558 = vld [vmem:[%s3] sm:$0xff]
  %v559 = vld [vmem:[%s3 + $0x8] sm:$0xff]
  %v560 = vld [vmem:[%s3 + $0x10] sm:$0xff]
  %v561 = vld [vmem:[%s3 + $0x18] sm:$0xff]
  %v562 = vld [vmem:[%s3 + $0x20] sm:$0xff]
  %v563 = vld [vmem:[%s3 + $0x28] sm:$0xff]
  %v564 = vld [vmem:[%s3 + $0x30] sm:$0xff]
  %v565 = vld [vmem:[%s3 + $0x38] sm:$0xff]
  %v566 = vld [vmem:[%s3 + $0x40] sm:$0xff]
  %v567 = vld [vmem:[%s3 + $0x48] sm:$0xff]
  %v568 = vld [vmem:[%s3 + $0x50] sm:$0xff]
  %v569 = vld [vmem:[%s3 + $0x58] sm:$0xff]
  %v570 = vld [vmem:[%s3 + $0x60] sm:$0xff]
  %v571 = vld [vmem:[%s3 + $0x68] sm:$0xff]
  %v572 = vld [vmem:[%s3 + $0x70] sm:$0xff]
  %v573 = vld [vmem:[%s3 + $0x78] sm:$0xff]
  %v574 = vld [vmem:[%s4] sm:$0x1]
  %v576 = vlaneseq
  %v577 = vshrl.u32 %v576, 7
  %v578 = vsub.s32 0, %v577
  %v579 = vrot.slane %v574, %v578
  %581 = vmatprep.subr.mxu0 0.0
  %582 = vmatpush1.msra.mxu0 %v558
  %583 = vmatprep.subr.mxu0 0.0
  %584 = vmatpush1.msra.mxu0 %v559
  %585 = vmatprep.subr.mxu0 0.0
  %586 = vmatpush1.msra.mxu0 %v560
  %587 = vmatprep.subr.mxu0 0.0
  %588 = vmatpush1.msra.mxu0 %v561
  %589 = vmatprep.subr.mxu0 0.0
  %590 = vmatpush1.msra.mxu0 %v562
  %591 = vmatprep.subr.mxu0 0.0
  %592 = vmatpush1.msra.mxu0 %v563
  %593 = vmatprep.subr.mxu0 0.0
  %594 = vmatpush1.msra.mxu0 %v564
  %595 = vmatprep.subr.mxu0 0.0
  %596 = vmatpush1.msra.mxu0 %v565
  %597 = vmatprep.subr.mxu0 0.0
  %598 = vmatpush1.msra.mxu0 %v566
  %599 = vmatprep.subr.mxu0 0.0
  %600 = vmatpush1.msra.mxu0 %v567
  %601 = vmatprep.subr.mxu0 0.0
  %602 = vmatpush1.msra.mxu0 %v568
  %603 = vmatprep.subr.mxu0 0.0
  %604 = vmatpush1.msra.mxu0 %v569
  %605 = vmatprep.subr.mxu0 0.0
  %606 = vmatpush1.msra.mxu0 %v570
  %607 = vmatprep.subr.mxu0 0.0
  %608 = vmatpush1.msra.mxu0 %v571
  %609 = vmatprep.subr.mxu0 0.0
  %610 = vmatpush1.msra.mxu0 %v572
  %611 = vmatprep.subr.mxu0 0.0
  %612 = vmatpush1.msra.mxu0 %v573
  %613 = vmatprep.subr.mxu0 0.0
  %614 = vmatpush1.msra.mxu0 0.0
  %615 = vmatprep.subr.mxu0 0.0
  %616 = vmatpush1.msra.mxu0 0.0
  %617 = vmatprep.subr.mxu0 0.0
  %618 = vmatpush1.msra.mxu0 0.0
  %619 = vmatprep.subr.mxu0 0.0
  %620 = vmatpush1.msra.mxu0 0.0
  %621 = vmatprep.subr.mxu0 0.0
  %622 = vmatpush1.msra.mxu0 0.0
  %623 = vmatprep.subr.mxu0 0.0
  %624 = vmatpush1.msra.mxu0 0.0
  %625 = vmatprep.subr.mxu0 0.0
  %626 = vmatpush1.msra.mxu0 0.0
  %627 = vmatprep.subr.mxu0 0.0
  %628 = vmatpush1.msra.mxu0 0.0
  %629 = vmatprep.subr.mxu0 0.0
  %630 = vmatpush1.msra.mxu0 0.0
  %631 = vmatprep.subr.mxu0 0.0
  %632 = vmatpush1.msra.mxu0 0.0
  %633 = vmatprep.subr.mxu0 0.0
  %634 = vmatpush1.msra.mxu0 0.0
  %635 = vmatprep.subr.mxu0 0.0
  %636 = vmatpush1.msra.mxu0 0.0
  %637 = vmatprep.subr.mxu0 0.0
  %638 = vmatpush1.msra.mxu0 0.0
  %639 = vmatprep.subr.mxu0 0.0
  %640 = vmatpush1.msra.mxu0 0.0
  %641 = vmatprep.subr.mxu0 0.0
  %642 = vmatpush1.msra.mxu0 0.0
  %643 = vmatprep.subr.mxu0 0.0
  %644 = vmatpush1.msra.mxu0 0.0
  %645 = vmatprep.mubr.f32.mxu0 0.0
  %646 = vmatmul.mubr.f32.gmra.mrb[0].mxu0 %v528
  %v647 = vpop.f32.mrb[0].mxu0
  %v648 = vadd.f32 %v579, %v647
  %v649 = vpop.f32.mrb[0].mxu0
  %650 = vmatprep.mubr.f32.mxu0 0.0
  %651 = vmatmul.mubr.f32.gmra.mrb[0].mxu0 %v529
  %v652 = vpop.f32.mrb[0].mxu0
  %v653 = vadd.f32 %v579, %v652
  %v654 = vpop.f32.mrb[0].mxu0
  %655 = vmatprep.mubr.f32.mxu0 0.0
  %656 = vmatmul.mubr.f32.gmra.mrb[0].mxu0 %v530
  %v657 = vpop.f32.mrb[0].mxu0
  %v658 = vadd.f32 %v579, %v657
  %v659 = vpop.f32.mrb[0].mxu0
  %660 = vmatprep.mubr.f32.mxu0 0.0
  %661 = vmatmul.mubr.f32.gmra.mrb[0].mxu0 %v531
  %v662 = vpop.f32.mrb[0].mxu0
  %v663 = vadd.f32 %v579, %v662
  %v664 = vpop.f32.mrb[0].mxu0
  %665 = vmatprep.mubr.f32.mxu0 0.0
  %666 = vmatmul.mubr.f32.gmra.mrb[0].mxu0 %v532
  %v667 = vpop.f32.mrb[0].mxu0
  %v668 = vadd.f32 %v579, %v667
  %v669 = vpop.f32.mrb[0].mxu0
  %670 = vmatprep.mubr.f32.mxu0 0.0
  %671 = vmatmul.mubr.f32.gmra.mrb[0].mxu0 %v533
  %v672 = vpop.f32.mrb[0].mxu0
  %v673 = vadd.f32 %v579, %v672
  %v674 = vpop.f32.mrb[0].mxu0
  %675 = vmatprep.mubr.f32.mxu0 0.0
  %676 = vmatmul.mubr.f32.gmra.mrb[0].mxu0 %v534
  %v677 = vpop.f32.mrb[0].mxu0
  %v678 = vadd.f32 %v579, %v677
  %v679 = vpop.f32.mrb[0].mxu0
  %680 = vmatprep.mubr.f32.mxu0 0.0
  %681 = vmatmul.mubr.f32.gmra.mrb[0].mxu0 %v535
  %v682 = vpop.f32.mrb[0].mxu0
  %v683 = vadd.f32 %v579, %v682
  %v684 = vpop.f32.mrb[0].mxu0
  %685 = vmatprep.mubr.f32.mxu0 0.0
  %686 = vmatmul.mubr.f32.gmra.mrb[0].mxu0 %v536
  %v687 = vpop.f32.mrb[0].mxu0
  %v688 = vadd.f32 %v579, %v687
  %v689 = vpop.f32.mrb[0].mxu0
  %690 = vmatprep.mubr.f32.mxu0 0.0
  %691 = vmatmul.mubr.f32.gmra.mrb[0].mxu0 %v537
  %v692 = vpop.f32.mrb[0].mxu0
  %v693 = vadd.f32 %v579, %v692
  %v694 = vpop.f32.mrb[0].mxu0
  %695 = vmatprep.mubr.f32.mxu0 0.0
  %696 = vmatmul.mubr.f32.gmra.mrb[0].mxu0 %v538
  %v697 = vpop.f32.mrb[0].mxu0
  %v698 = vadd.f32 %v579, %v697
  %v699 = vpop.f32.mrb[0].mxu0
  %700 = vmatprep.mubr.f32.mxu0 0.0
  %701 = vmatmul.mubr.f32.gmra.mrb[0].mxu0 %v539
  %v702 = vpop.f32.mrb[0].mxu0
  %v703 = vadd.f32 %v579, %v702
  %v704 = vpop.f32.mrb[0].mxu0
  %705 = vmatprep.mubr.f32.mxu0 0.0
  %706 = vmatmul.mubr.f32.gmra.mrb[0].mxu0 %v540
  %v707 = vpop.f32.mrb[0].mxu0
  %v708 = vadd.f32 %v579, %v707
  %v709 = vpop.f32.mrb[0].mxu0
  %710 = vmatprep.mubr.f32.mxu0 0.0
  %711 = vmatmul.mubr.f32.gmra.mrb[0].mxu0 %v541
  %v712 = vpop.f32.mrb[0].mxu0
  %v713 = vadd.f32 %v579, %v712
  %v714 = vpop.f32.mrb[0].mxu0
  %715 = vmatprep.mubr.f32.mxu0 0.0
  %716 = vmatmul.mubr.f32.gmra.mrb[0].mxu0 %v542
  %v717 = vpop.f32.mrb[0].mxu0
  %v718 = vadd.f32 %v579, %v717
  %v719 = vpop.f32.mrb[0].mxu0
  %720 = vmatprep.mubr.f32.mxu0 0.0
  %721 = vmatmul.mubr.f32.gmra.mrb[0].mxu0 %v543
  %v722 = vpop.f32.mrb[0].mxu0
  %v723 = vadd.f32 %v579, %v722
  %v724 = vpop.f32.mrb[0].mxu0
  %725 = vmatprep.mubr.f32.mxu0 0.0
  %726 = vmatmul.mubr.f32.gmra.mrb[0].mxu0 %v544
  %v727 = vpop.f32.mrb[0].mxu0
  %v728 = vadd.f32 %v579, %v727
  %v729 = vpop.f32.mrb[0].mxu0
  %730 = vmatprep.mubr.f32.mxu0 0.0
  %731 = vmatmul.mubr.f32.gmra.mrb[0].mxu0 %v545
  %v732 = vpop.f32.mrb[0].mxu0
  %v733 = vadd.f32 %v579, %v732
  %v734 = vpop.f32.mrb[0].mxu0
  %735 = vmatprep.mubr.f32.mxu0 0.0
  %736 = vmatmul.mubr.f32.gmra.mrb[0].mxu0 %v546
  %v737 = vpop.f32.mrb[0].mxu0
  %v738 = vadd.f32 %v579, %v737
  %v739 = vpop.f32.mrb[0].mxu0
  %740 = vmatprep.mubr.f32.mxu0 0.0
  %741 = vmatmul.mubr.f32.gmra.mrb[0].mxu0 %v547
  %v742 = vpop.f32.mrb[0].mxu0
  %v743 = vadd.f32 %v579, %v742
  %v744 = vpop.f32.mrb[0].mxu0
  %745 = vmatprep.mubr.f32.mxu0 0.0
  %746 = vmatmul.mubr.f32.gmra.mrb[0].mxu0 %v548
  %v747 = vpop.f32.mrb[0].mxu0
  %v748 = vadd.f32 %v579, %v747
  %v749 = vpop.f32.mrb[0].mxu0
  %750 = vmatprep.mubr.f32.mxu0 0.0
  %751 = vmatmul.mubr.f32.gmra.mrb[0].mxu0 %v549
  %v752 = vpop.f32.mrb[0].mxu0
  %v753 = vadd.f32 %v579, %v752
  %v754 = vpop.f32.mrb[0].mxu0
  %755 = vmatprep.mubr.f32.mxu0 0.0
  %756 = vmatmul.mubr.f32.gmra.mrb[0].mxu0 %v550
  %v757 = vpop.f32.mrb[0].mxu0
  %v758 = vadd.f32 %v579, %v757
  %v759 = vpop.f32.mrb[0].mxu0
  %760 = vmatprep.mubr.f32.mxu0 0.0
  %761 = vmatmul.mubr.f32.gmra.mrb[0].mxu0 %v551
  %v762 = vpop.f32.mrb[0].mxu0
  %v763 = vadd.f32 %v579, %v762
  %v764 = vpop.f32.mrb[0].mxu0
  %765 = vmatprep.mubr.f32.mxu0 0.0
  %766 = vmatmul.mubr.f32.gmra.mrb[0].mxu0 %v552
  %v767 = vpop.f32.mrb[0].mxu0
  %v768 = vadd.f32 %v579, %v767
  %v769 = vpop.f32.mrb[0].mxu0
  %770 = vmatprep.mubr.f32.mxu0 0.0
  %771 = vmatmul.mubr.f32.gmra.mrb[0].mxu0 %v553
  %v772 = vpop.f32.mrb[0].mxu0
  %v773 = vadd.f32 %v579, %v772
  %v774 = vpop.f32.mrb[0].mxu0
  %775 = vmatprep.mubr.f32.mxu0 0.0
  %776 = vmatmul.mubr.f32.gmra.mrb[0].mxu0 %v554
  %v777 = vpop.f32.mrb[0].mxu0
  %v778 = vadd.f32 %v579, %v777
  %v779 = vpop.f32.mrb[0].mxu0
  %780 = vmatprep.mubr.f32.mxu0 0.0
  %781 = vmatmul.mubr.f32.gmra.mrb[0].mxu0 %v555
  %v782 = vpop.f32.mrb[0].mxu0
  %v783 = vadd.f32 %v579, %v782
  %v784 = vpop.f32.mrb[0].mxu0
  %785 = vmatprep.mubr.f32.mxu0 0.0
  %786 = vmatmul.mubr.f32.gmra.mrb[0].mxu0 %v556
  %v787 = vpop.f32.mrb[0].mxu0
  %v788 = vadd.f32 %v579, %v787
  %v789 = vpop.f32.mrb[0].mxu0
  %790 = vmatprep.mubr.f32.mxu0 0.0
  %791 = vmatmul.mubr.f32.gmra.mrb[0].mxu0 %v557
  %v792 = vpop.f32.mrb[0].mxu0
  %v793 = vadd.f32 %v579, %v792
  %v794 = vpop.f32.mrb[0].mxu0
  %795 = vdwg.mxu0
  %796 = vst [vmem:[%s5] sm:$0xff] %v648
  %797 = vst [vmem:[%s5 + $0x8] sm:$0xff] %v653
  %798 = vst [vmem:[%s5 + $0x10] sm:$0xff] %v658
  %799 = vst [vmem:[%s5 + $0x18] sm:$0xff] %v663
  %800 = vst [vmem:[%s5 + $0x20] sm:$0xff] %v668
  %801 = vst [vmem:[%s5 + $0x28] sm:$0xff] %v673
  %802 = vst [vmem:[%s5 + $0x30] sm:$0xff] %v678
  %803 = vst [vmem:[%s5 + $0x38] sm:$0xff] %v683
  %804 = vst [vmem:[%s5 + $0x40] sm:$0xff] %v688
  %805 = vst [vmem:[%s5 + $0x48] sm:$0xff] %v693
  %806 = vst [vmem:[%s5 + $0x50] sm:$0xff] %v698
  %807 = vst [vmem:[%s5 + $0x58] sm:$0xff] %v703
  %808 = vst [vmem:[%s5 + $0x60] sm:$0xff] %v708
  %809 = vst [vmem:[%s5 + $0x68] sm:$0xff] %v713
  %810 = vst [vmem:[%s5 + $0x70] sm:$0xff] %v718
  %811 = vst [vmem:[%s5 + $0x78] sm:$0xff] %v723
  %812 = vst [vmem:[%s5 + $0x80] sm:$0xff] %v728
  %813 = vst [vmem:[%s5 + $0x88] sm:$0xff] %v733
  %814 = vst [vmem:[%s5 + $0x90] sm:$0xff] %v738
  %815 = vst [vmem:[%s5 + $0x98] sm:$0xff] %v743
  %816 = vst [vmem:[%s5 + $0xa0] sm:$0xff] %v748
  %817 = vst [vmem:[%s5 + $0xa8] sm:$0xff] %v753
  %818 = vst [vmem:[%s5 + $0xb0] sm:$0xff] %v758
  %819 = vst [vmem:[%s5 + $0xb8] sm:$0xff] %v763
  %820 = vst [vmem:[%s5 + $0xc0] sm:$0xff] %v768
  %821 = vst [vmem:[%s5 + $0xc8] sm:$0xff] %v773
  %822 = vst [vmem:[%s5 + $0xd0] sm:$0xff] %v778
  %823 = vst [vmem:[%s5 + $0xd8] sm:$0xff] %v783
  %824 = vst [vmem:[%s5 + $0xe0] sm:$0xff] %v788
  %825 = vst [vmem:[%s5 + $0xe8] sm:$0xff] %v793
  // Predicated region
  $region22: #{clip_projection.1} parent=0 // pred_check
    _
  $region23: #{clip_projection.1} parent=0 // pred_check_branch
    %827 = sbr.rel (0) target = $region25
  $region24: #{clip_projection.1} parent=0 // pred_region
    _
  $region25: #{clip_projection.1} parent=0 // pred_fallthru
    _
  // Predicated region
  $region26: #{clip_projection.1} parent=0 // pred_check
    _
  $region27: #{clip_projection.1} parent=0 // pred_check_branch
    %829 = sbr.rel (0) target = $region29
  $region28: #{clip_projection.1} parent=0 // pred_region
    _
  $region29: #{clip_projection.1} parent=0 // pred_fallthru
    _

</llo_original>
